<compile_context>
chip_gen: v5e
topology: v5e:2x2
jax: 0.10.0
libtpu: 0.0.40
codegen_flags: <defaults>
</compile_context>

<pallas_src>
import jax
import jax.numpy as jnp
import numpy as np
from jax.experimental import pallas as pl
from jax.experimental.pallas import tpu as pltpu


def attention_step_kernel(oh_emb_ref, batch_H_ref, hproj_ref,
                          w_h2h_ref, b_h2h_ref, w_score_ref,
                          w_ih_cat_ref, b_cat_ref,
                          hid_ref,
                          h_scr, c_scr):
    step = pl.program_id(0)
    H = h_scr.shape[-1]

    @pl.when(step == 0)
    def _():
        h_scr[...] = jnp.zeros_like(h_scr)
        c_scr[...] = jnp.zeros_like(c_scr)

    h = h_scr[...]                      # [B, H]
    c = c_scr[...]                      # [B, H]

    # prev_hidden_proj = h2h(h) (with bias), broadcast over encoder steps
    prev_proj = (jnp.dot(h, w_h2h_ref[...], preferred_element_type=jnp.float32)
                 + b_h2h_ref[...])                                    # [B, H]
    tanh_sum = jnp.tanh(hproj_ref[...] + prev_proj[:, None, :])       # [B, T, H]

    # e = score(tanh(...)) -> [B, T]; softmax over T (dim=1 in PyTorch)
    e = jnp.sum(tanh_sum * w_score_ref[...][0], axis=-1)              # [B, T]
    e_max = jnp.max(e, axis=1, keepdims=True)
    p = jnp.exp(e - e_max)
    alpha = p * pl.reciprocal(jnp.sum(p, axis=1, keepdims=True), approx=True)

    # context = alpha^T @ batch_H  -> [B, D]  (MXU batched matvec, mirrors torch.bmm)
    context = jnp.einsum('bqt,btd->bqd', alpha[:, None, :], batch_H_ref[...],
                         preferred_element_type=jnp.float32)[:, 0, :]  # [B, D]

    # LSTMCell: fused input matmul on [context | h]; the one-hot contribution comes in
    # pre-gathered as an embedding (oh_emb_ref[step]), bias b_ih + b_hh is pre-folded.
    x = jnp.concatenate([context, h], axis=-1)                         # [B, D+H]
    gates = (jnp.dot(x, w_ih_cat_ref[...], preferred_element_type=jnp.float32)
             + oh_emb_ref[step] + b_cat_ref[...])                      # [B, 4H]

    i_g = jax.nn.sigmoid(gates[:, 0 * H:1 * H])
    f_g = jax.nn.sigmoid(gates[:, 1 * H:2 * H])
    g_g = jnp.tanh(gates[:, 2 * H:3 * H])
    o_g = jax.nn.sigmoid(gates[:, 3 * H:4 * H])

    c_new = f_g * c + i_g * g_g
    h_new = o_g * jnp.tanh(c_new)

    h_scr[...] = h_new
    c_scr[...] = c_new
    hid_ref[0] = h_new                                                 # [B, H]


def attention_forward(batch_H, text, params, num_steps):
    """batch_H: [B, T, D] f32, text: [B, num_steps] int32 -> probs [B, num_steps, C]."""
    B, T, D = batch_H.shape
    H = params["w_h2h"].shape[0]

    # --- loop-invariant work hoisted to XLA ---------------------------------------
    # i2h projection of the encoder states: one full-size MXU matmul.
    hproj = jnp.einsum("btd,dh->bth", batch_H, params["w_i2h"])        # [B, T, H]
    # one_hot(text) @ W_ih_oh is just an embedding lookup: gather rows of W_ih_oh.
    oh_emb = jnp.transpose(jnp.take(params["w_ih_oh"], text, axis=0),
                           (1, 0, 2))                                  # [S, B, 4H]
    # Fuse the LSTM input matmuls: [context | h] @ [W_ih_ctx ; W_hh], fold the biases.
    w_ih_cat = jnp.concatenate([params["w_ih_ctx"], params["w_hh"]], axis=0)  # [D+H, 4H]
    b_cat = params["b_ih"] + params["b_hh"]                            # [1, 4H]
    # -------------------------------------------------------------------------------

    resident = lambda a: pl.BlockSpec(a.shape, lambda i, nd=a.ndim: (0,) * nd)

    grid_spec = pltpu.PrefetchScalarGridSpec(
        num_scalar_prefetch=0,
        grid=(num_steps,),
        in_specs=[
            pl.BlockSpec((num_steps, B, 4 * H), lambda i: (0, 0, 0)),  # oh_emb, resident
            pl.BlockSpec((B, T, D), lambda i: (0, 0, 0)),              # batch_H, resident
            pl.BlockSpec((B, T, H), lambda i: (0, 0, 0)),              # hproj,   resident
            resident(params["w_h2h"]),
            resident(params["b_h2h"]),
            resident(params["w_score"]),
            resident(w_ih_cat),
            resident(b_cat),
        ],
        out_specs=pl.BlockSpec((1, B, H), lambda i: (i, 0, 0)),
        scratch_shapes=[
            pltpu.VMEM((B, H), jnp.float32),       # h (carried across grid steps)
            pltpu.VMEM((B, H), jnp.float32),       # c
        ],
    )

    hiddens = pl.pallas_call(
        attention_step_kernel,
        out_shape=jax.ShapeDtypeStruct((num_steps, B, H), jnp.float32),
        grid_spec=grid_spec,
        compiler_params=pltpu.CompilerParams(
            dimension_semantics=("arbitrary",)),   # sequential: carries h/c state
    )(oh_emb, batch_H, hproj,
      params["w_h2h"], params["b_h2h"], params["w_score"], w_ih_cat, b_cat)

    # Generator hoisted out of the recurrent loop: one lane-dense matmul.
    out_h = jnp.transpose(hiddens, (1, 0, 2))                          # [B, S, H]
    return out_h @ params["w_gen"] + params["b_gen"]                   # [B, S, C]


def attention_reference(batch_H, text, params, num_steps):
    """Pure-JAX reference mirroring the PyTorch module."""
    B = batch_H.shape[0]
    H = params["w_h2h"].shape[0]
    C = params["w_gen"].shape[1]
    onehots = jnp.transpose(jax.nn.one_hot(text, C, dtype=jnp.float32), (1, 0, 2))
    h = jnp.zeros((B, H), jnp.float32)
    c = jnp.zeros((B, H), jnp.float32)
    hproj = jnp.einsum("btd,dh->bth", batch_H, params["w_i2h"])
    outs = []
    for i in range(num_steps):
        prev = h @ params["w_h2h"] + params["b_h2h"]
        t = jnp.tanh(hproj + prev[:, None, :])
        e = jnp.sum(t * params["w_score"][0], axis=-1)
        alpha = jax.nn.softmax(e, axis=1)
        ctx = jnp.einsum("bt,btd->bd", alpha, batch_H)
        gates = (ctx @ params["w_ih_ctx"] + onehots[i] @ params["w_ih_oh"]
                 + params["b_ih"] + h @ params["w_hh"] + params["b_hh"])
        i_g = jax.nn.sigmoid(gates[:, 0 * H:1 * H])
        f_g = jax.nn.sigmoid(gates[:, 1 * H:2 * H])
        g_g = jnp.tanh(gates[:, 2 * H:3 * H])
        o_g = jax.nn.sigmoid(gates[:, 3 * H:4 * H])
        c = f_g * c + i_g * g_g
        h = o_g * jnp.tanh(c)
        outs.append(h)
    oh = jnp.stack(outs, axis=1)                   # [B, num_steps, H]
    return oh @ params["w_gen"] + params["b_gen"]


def make_params(key, input_size, hidden_size, num_classes):
    D, H, C = input_size, hidden_size, num_classes
    ks = jax.random.split(key, 11)
    n = lambda k, s: (0.1 * jax.random.normal(k, s)).astype(jnp.float32)
    return {
        "w_i2h":    n(ks[0], (D, H)),          # i2h (no bias)
        "w_h2h":    n(ks[1], (H, H)),          # h2h weight
        "b_h2h":    n(ks[2], (1, H)),          # h2h bias
        "w_score":  n(ks[3], (1, H)),          # score (no bias), out_dim = 1
        "w_ih_ctx": n(ks[4], (D, 4 * H)),      # LSTMCell W_ih, context part
        "w_ih_oh":  n(ks[5], (C, 4 * H)),      # LSTMCell W_ih, onehot part
        "b_ih":     n(ks[6], (1, 4 * H)),
        "w_hh":     n(ks[7], (H, 4 * H)),
        "b_hh":     n(ks[8], (1, 4 * H)),
        "w_gen":    n(ks[9], (H, C)),          # generator weight
        "b_gen":    n(ks[10], (1, C)),         # generator bias
    }


if __name__ == "__main__":
    B, T = 2, 8                 # batch, encoder num_steps
    input_size = 32             # contextual feature channels
    hidden_size = 32
    num_classes = 16
    batch_max_length = 5
    num_steps = batch_max_length + 1

    key = jax.random.PRNGKey(0)
    k_h, k_t, k_p = jax.random.split(key, 3)
    batch_H = jax.random.normal(k_h, (B, T, input_size), dtype=jnp.float32)
    text = jax.random.randint(k_t, (B, num_steps), 0, num_classes, dtype=jnp.int32)
    params = make_params(k_p, input_size, hidden_size, num_classes)

    probs = attention_forward(batch_H, text, params, num_steps)
    probs = jax.block_until_ready(probs)

    probs_ref = jax.block_until_ready(
        attention_reference(batch_H, text, params, num_steps))

    np.testing.assert_allclose(np.asarray(probs), np.asarray(probs_ref),
                               rtol=1e-2, atol=1e-2)
    assert probs.shape == (B, num_steps, num_classes)
    print("KERNEL_OK")
</pallas_src>

<mosaic_0001>
module attributes {stable_mosaic.version = 11 : i64} {
  func.func @attention_step_kernel(%arg0: i32, %arg1: memref<6x2x128xf32, #tpu.memory_space<vmem>>, %arg2: memref<2x8x32xf32, #tpu.memory_space<vmem>>, %arg3: memref<2x8x32xf32, #tpu.memory_space<vmem>>, %arg4: memref<32x32xf32, #tpu.memory_space<vmem>>, %arg5: memref<1x32xf32, #tpu.memory_space<vmem>>, %arg6: memref<1x32xf32, #tpu.memory_space<vmem>>, %arg7: memref<64x128xf32, #tpu.memory_space<vmem>>, %arg8: memref<1x128xf32, #tpu.memory_space<vmem>>, %arg9: memref<1x2x32xf32, #tpu.memory_space<vmem>>, %arg10: memref<2x32xf32, #tpu.memory_space<vmem>>, %arg11: memref<2x32xf32, #tpu.memory_space<vmem>>) attributes {dimension_semantics = [#tpu.dimension_semantics<arbitrary>], iteration_bounds = array<i64: 6>, scalar_prefetch = 0 : i64, scratch_operands = 2 : i64, tpu.core_type = #tpu.core_type<tc>, window_params = [{pipeline_mode = #tpu.pipeline_mode<synchronous>, transform_indices = @transform_0, window_bounds = array<i64: 6, 2, 128>}, {pipeline_mode = #tpu.pipeline_mode<synchronous>, transform_indices = @transform_1, window_bounds = array<i64: 2, 8, 32>}, {pipeline_mode = #tpu.pipeline_mode<synchronous>, transform_indices = @transform_2, window_bounds = array<i64: 2, 8, 32>}, {pipeline_mode = #tpu.pipeline_mode<synchronous>, transform_indices = @transform_3, window_bounds = array<i64: 32, 32>}, {pipeline_mode = #tpu.pipeline_mode<synchronous>, transform_indices = @transform_4, window_bounds = array<i64: 1, 32>}, {pipeline_mode = #tpu.pipeline_mode<synchronous>, transform_indices = @transform_5, window_bounds = array<i64: 1, 32>}, {pipeline_mode = #tpu.pipeline_mode<synchronous>, transform_indices = @transform_6, window_bounds = array<i64: 64, 128>}, {pipeline_mode = #tpu.pipeline_mode<synchronous>, transform_indices = @transform_7, window_bounds = array<i64: 1, 128>}, {transform_indices = @transform_8, window_bounds = array<i64: 1, 2, 32>}]} {
    %c0_i32 = arith.constant 0 : i32
    %0 = arith.cmpi eq, %arg0, %c0_i32 : i32
    %1 = arith.extui %0 : i1 to i32
    %c0_i32_0 = arith.constant 0 : i32
    %2 = arith.cmpi ne, %1, %c0_i32_0 : i32
    scf.if %2 {
      %cst_37 = arith.constant 0.000000e+00 : f32
      %75 = vector.broadcast %cst_37 : f32 to vector<2x32xf32>
      %c0_38 = arith.constant 0 : index
      %c0_39 = arith.constant 0 : index
      %76 = vector.load %arg10[%c0_38, %c0_39] : memref<2x32xf32, #tpu.memory_space<vmem>>, vector<2x32xf32>
      tpu.vector_store %arg10[%c0_38, %c0_39], %75 {strides = array<i32>} : memref<2x32xf32, #tpu.memory_space<vmem>>, vector<2x32xf32>,
      %cst_40 = arith.constant 0.000000e+00 : f32
      %77 = vector.broadcast %cst_40 : f32 to vector<2x32xf32>
      %c0_41 = arith.constant 0 : index
      %c0_42 = arith.constant 0 : index
      %78 = vector.load %arg11[%c0_41, %c0_42] : memref<2x32xf32, #tpu.memory_space<vmem>>, vector<2x32xf32>
      tpu.vector_store %arg11[%c0_41, %c0_42], %77 {strides = array<i32>} : memref<2x32xf32, #tpu.memory_space<vmem>>, vector<2x32xf32>,
    } else {
    }
    %c0 = arith.constant 0 : index
    %c0_1 = arith.constant 0 : index
    %3 = vector.load %arg10[%c0, %c0_1] : memref<2x32xf32, #tpu.memory_space<vmem>>, vector<2x32xf32>
    %c0_2 = arith.constant 0 : index
    %c0_3 = arith.constant 0 : index
    %4 = vector.load %arg11[%c0_2, %c0_3] : memref<2x32xf32, #tpu.memory_space<vmem>>, vector<2x32xf32>
    %c0_4 = arith.constant 0 : index
    %c0_5 = arith.constant 0 : index
    %5 = vector.load %arg4[%c0_4, %c0_5] : memref<32x32xf32, #tpu.memory_space<vmem>>, vector<32x32xf32>
    %cst = arith.constant dense<0.000000e+00> : vector<2x32xf32>
    %6 = tpu.matmul %3, %5, %cst {dimension_numbers = #tpu.dot_dimension_numbers<[1], [0], [0], [1], [0, 0, 1, 1], [], []>} : vector<2x32xf32>, vector<32x32xf32>, vector<2x32xf32> -> vector<2x32xf32>
    %c0_6 = arith.constant 0 : index
    %c0_7 = arith.constant 0 : index
    %7 = vector.load %arg5[%c0_6, %c0_7] : memref<1x32xf32, #tpu.memory_space<vmem>>, vector<1x32xf32>
    %8 = vector.broadcast %7 : vector<1x32xf32> to vector<2x32xf32>
    %9 = arith.addf %6, %8 : vector<2x32xf32>
    %c0_8 = arith.constant 0 : index
    %c0_9 = arith.constant 0 : index
    %c0_10 = arith.constant 0 : index
    %10 = vector.load %arg3[%c0_8, %c0_9, %c0_10] : memref<2x8x32xf32, #tpu.memory_space<vmem>>, vector<2x8x32xf32>
    %11 = vector.shape_cast %9 : vector<2x32xf32> to vector<2x1x32xf32>
    %12 = vector.broadcast %11 : vector<2x1x32xf32> to vector<2x8x32xf32>
    %13 = arith.addf %10, %12 : vector<2x8x32xf32>
    %14 = math.tanh %13 : vector<2x8x32xf32>
    %c0_11 = arith.constant 0 : index
    %c0_12 = arith.constant 0 : index
    %15 = vector.load %arg6[%c0_11, %c0_12] : memref<1x32xf32, #tpu.memory_space<vmem>>, vector<1x32xf32>
    %16 = vector.shape_cast %15 : vector<1x32xf32> to vector<32xf32>
    %17 = vector.shape_cast %16 : vector<32xf32> to vector<1x1x32xf32>
    %18 = vector.broadcast %17 : vector<1x1x32xf32> to vector<2x8x32xf32>
    %19 = arith.mulf %14, %18 : vector<2x8x32xf32>
    %cst_13 = arith.constant dense<0.000000e+00> : vector<2x8xf32>
    %20 = vector.multi_reduction <add>, %19, %cst_13 [2] : vector<2x8x32xf32> to vector<2x8xf32>
    %cst_14 = arith.constant dense<0xFF800000> : vector<2xf32>
    %21 = vector.multi_reduction <maximumf>, %20, %cst_14 [1] : vector<2x8xf32> to vector<2xf32>
    %22 = vector.shape_cast %21 : vector<2xf32> to vector<2x1xf32>
    %23 = vector.broadcast %22 : vector<2x1xf32> to vector<2x8xf32>
    %24 = arith.subf %20, %23 : vector<2x8xf32>
    %25 = math.exp %24 : vector<2x8xf32>
    %cst_15 = arith.constant dense<0.000000e+00> : vector<2xf32>
    %26 = vector.multi_reduction <add>, %25, %cst_15 [1] : vector<2x8xf32> to vector<2xf32>
    %27 = vector.shape_cast %26 : vector<2xf32> to vector<2x1xf32>
    %28 = tpu.reciprocal %27 {approx = true} : vector<2x1xf32> -> vector<2x1xf32>
    %29 = vector.broadcast %28 : vector<2x1xf32> to vector<2x8xf32>
    %30 = arith.mulf %25, %29 : vector<2x8xf32>
    %31 = vector.shape_cast %30 : vector<2x8xf32> to vector<2x1x8xf32>
    %c0_16 = arith.constant 0 : index
    %c0_17 = arith.constant 0 : index
    %c0_18 = arith.constant 0 : index
    %32 = vector.load %arg2[%c0_16, %c0_17, %c0_18] : memref<2x8x32xf32, #tpu.memory_space<vmem>>, vector<2x8x32xf32>
    "tpu.trace_start"() <{level = 10 : i32, message = "bqt,btd->bqd"}> : () -> ()
    %cst_19 = arith.constant dense<0.000000e+00> : vector<2x1x32xf32>
    %33 = tpu.matmul %31, %32, %cst_19 {dimension_numbers = #tpu.dot_dimension_numbers<[2], [1], [1], [2], [0, 0, 0, 1, 1, 2], [0], [0]>} : vector<2x1x8xf32>, vector<2x8x32xf32>, vector<2x1x32xf32> -> vector<2x1x32xf32>
    "tpu.trace_stop"() : () -> ()
    %34 = vector.shape_cast %33 : vector<2x1x32xf32> to vector<2x32xf32>
    %35 = tpu.concatenate %34, %3 in 1 : vector<2x32xf32>, vector<2x32xf32> -> vector<2x64xf32>
    %c0_20 = arith.constant 0 : index
    %c0_21 = arith.constant 0 : index
    %36 = vector.load %arg7[%c0_20, %c0_21] : memref<64x128xf32, #tpu.memory_space<vmem>>, vector<64x128xf32>
    %cst_22 = arith.constant dense<0.000000e+00> : vector<2x128xf32>
    %37 = tpu.matmul %35, %36, %cst_22 {dimension_numbers = #tpu.dot_dimension_numbers<[1], [0], [0], [1], [0, 0, 1, 1], [], []>} : vector<2x64xf32>, vector<64x128xf32>, vector<2x128xf32> -> vector<2x128xf32>
    %38 = arith.index_cast %arg0 : i32 to index
    %c0_23 = arith.constant 0 : index
    %c0_24 = arith.constant 0 : index
    %39 = vector.load %arg1[%38, %c0_23, %c0_24] : memref<6x2x128xf32, #tpu.memory_space<vmem>>, vector<1x2x128xf32>
    %40 = vector.shape_cast %39 : vector<1x2x128xf32> to vector<2x128xf32>
    %41 = arith.addf %37, %40 : vector<2x128xf32>
    %c0_25 = arith.constant 0 : index
    %c0_26 = arith.constant 0 : index
    %42 = vector.load %arg8[%c0_25, %c0_26] : memref<1x128xf32, #tpu.memory_space<vmem>>, vector<1x128xf32>
    %43 = vector.broadcast %42 : vector<1x128xf32> to vector<2x128xf32>
    %44 = arith.addf %41, %43 : vector<2x128xf32>
    %45 = vector.extract_strided_slice %44 {offsets = [0, 0], sizes = [2, 32], strides = [1, 1]} : vector<2x128xf32> to vector<2x32xf32>
    %46 = arith.negf %45 : vector<2x32xf32>
    %47 = math.exp %46 : vector<2x32xf32>
    %cst_27 = arith.constant 1.000000e+00 : f32
    %48 = vector.broadcast %cst_27 : f32 to vector<2x32xf32>
    %49 = arith.addf %48, %47 : vector<2x32xf32>
    %50 = arith.divf %48, %49 : vector<2x32xf32>
    %51 = vector.extract_strided_slice %44 {offsets = [0, 32], sizes = [2, 32], strides = [1, 1]} : vector<2x128xf32> to vector<2x32xf32>
    %52 = arith.negf %51 : vector<2x32xf32>
    %53 = math.exp %52 : vector<2x32xf32>
    %cst_28 = arith.constant 1.000000e+00 : f32
    %54 = vector.broadcast %cst_28 : f32 to vector<2x32xf32>
    %55 = arith.addf %54, %53 : vector<2x32xf32>
    %56 = arith.divf %54, %55 : vector<2x32xf32>
    %57 = vector.extract_strided_slice %44 {offsets = [0, 64], sizes = [2, 32], strides = [1, 1]} : vector<2x128xf32> to vector<2x32xf32>
    %58 = math.tanh %57 : vector<2x32xf32>
    %59 = vector.extract_strided_slice %44 {offsets = [0, 96], sizes = [2, 32], strides = [1, 1]} : vector<2x128xf32> to vector<2x32xf32>
    %60 = arith.negf %59 : vector<2x32xf32>
    %61 = math.exp %60 : vector<2x32xf32>
    %cst_29 = arith.constant 1.000000e+00 : f32
    %62 = vector.broadcast %cst_29 : f32 to vector<2x32xf32>
    %63 = arith.addf %62, %61 : vector<2x32xf32>
    %64 = arith.divf %62, %63 : vector<2x32xf32>
    %65 = arith.mulf %56, %4 : vector<2x32xf32>
    %66 = arith.mulf %50, %58 : vector<2x32xf32>
    %67 = arith.addf %65, %66 : vector<2x32xf32>
    %68 = math.tanh %67 : vector<2x32xf32>
    %69 = arith.mulf %64, %68 : vector<2x32xf32>
    %c0_30 = arith.constant 0 : index
    %c0_31 = arith.constant 0 : index
    %70 = vector.load %arg10[%c0_30, %c0_31] : memref<2x32xf32, #tpu.memory_space<vmem>>, vector<2x32xf32>
    tpu.vector_store %arg10[%c0_30, %c0_31], %69 {strides = array<i32>} : memref<2x32xf32, #tpu.memory_space<vmem>>, vector<2x32xf32>,
    %c0_32 = arith.constant 0 : index
    %c0_33 = arith.constant 0 : index
    %71 = vector.load %arg11[%c0_32, %c0_33] : memref<2x32xf32, #tpu.memory_space<vmem>>, vector<2x32xf32>
    tpu.vector_store %arg11[%c0_32, %c0_33], %67 {strides = array<i32>} : memref<2x32xf32, #tpu.memory_space<vmem>>, vector<2x32xf32>,
    %c0_34 = arith.constant 0 : index
    %c0_35 = arith.constant 0 : index
    %c0_36 = arith.constant 0 : index
    %72 = vector.load %arg9[%c0_34, %c0_35, %c0_36] : memref<1x2x32xf32, #tpu.memory_space<vmem>>, vector<1x2x32xf32>
    %73 = vector.shape_cast %72 : vector<1x2x32xf32> to vector<2x32xf32>
    %74 = vector.shape_cast %69 : vector<2x32xf32> to vector<1x2x32xf32>
    tpu.vector_store %arg9[%c0_34, %c0_35, %c0_36], %74 {strides = array<i32>} : memref<1x2x32xf32, #tpu.memory_space<vmem>>, vector<1x2x32xf32>,
    return
  }
  func.func @transform_0(%arg0: i32) -> (i32, i32, i32) {
    %c0_i32 = arith.constant 0 : i32
    %c0_i32_0 = arith.constant 0 : i32
    %c0_i32_1 = arith.constant 0 : i32
    %c0_i32_2 = arith.constant 0 : i32
    return %c0_i32, %c0_i32_0, %c0_i32_1 : i32, i32, i32
  }
  func.func @transform_1(%arg0: i32) -> (i32, i32, i32) {
    %c0_i32 = arith.constant 0 : i32
    %c0_i32_0 = arith.constant 0 : i32
    %c0_i32_1 = arith.constant 0 : i32
    %c0_i32_2 = arith.constant 0 : i32
    return %c0_i32, %c0_i32_0, %c0_i32_1 : i32, i32, i32
  }
  func.func @transform_2(%arg0: i32) -> (i32, i32, i32) {
    %c0_i32 = arith.constant 0 : i32
    %c0_i32_0 = arith.constant 0 : i32
    %c0_i32_1 = arith.constant 0 : i32
    %c0_i32_2 = arith.constant 0 : i32
    return %c0_i32, %c0_i32_0, %c0_i32_1 : i32, i32, i32
  }
  func.func @transform_3(%arg0: i32) -> (i32, i32) {
    %c0_i32 = arith.constant 0 : i32
    %c0_i32_0 = arith.constant 0 : i32
    %c0_i32_1 = arith.constant 0 : i32
    return %c0_i32, %c0_i32_0 : i32, i32
  }
  func.func @transform_4(%arg0: i32) -> (i32, i32) {
    %c0_i32 = arith.constant 0 : i32
    %c0_i32_0 = arith.constant 0 : i32
    %c0_i32_1 = arith.constant 0 : i32
    return %c0_i32, %c0_i32_0 : i32, i32
  }
  func.func @transform_5(%arg0: i32) -> (i32, i32) {
    %c0_i32 = arith.constant 0 : i32
    %c0_i32_0 = arith.constant 0 : i32
    %c0_i32_1 = arith.constant 0 : i32
    return %c0_i32, %c0_i32_0 : i32, i32
  }
  func.func @transform_6(%arg0: i32) -> (i32, i32) {
    %c0_i32 = arith.constant 0 : i32
    %c0_i32_0 = arith.constant 0 : i32
    %c0_i32_1 = arith.constant 0 : i32
    return %c0_i32, %c0_i32_0 : i32, i32
  }
  func.func @transform_7(%arg0: i32) -> (i32, i32) {
    %c0_i32 = arith.constant 0 : i32
    %c0_i32_0 = arith.constant 0 : i32
    %c0_i32_1 = arith.constant 0 : i32
    return %c0_i32, %c0_i32_0 : i32, i32
  }
  func.func @transform_8(%arg0: i32) -> (i32, i32, i32) {
    %c0_i32 = arith.constant 0 : i32
    %c0_i32_0 = arith.constant 0 : i32
    %c0_i32_1 = arith.constant 0 : i32
    return %arg0, %c0_i32, %c0_i32_0 : i32, i32, i32
  }
}

</mosaic_0001>

<llo_original>
// kernel: tpu_custom_call.1
$region0: #{tpu_custom_call.1}
  #allocation0 [shape = 'u32[]', space=smem, size = 0x4, offset = 0x4, fixed_abs, tag = 'smem constant byte address 0x4 - core index']
  #allocation1 [shape = 'u32[72,128]{1,0:T(1,128)}', space=vmem, size = 0x9000, scoped, tag = 'internal scratch']
  #allocation2 [shape = 'f32[2,32]{1,0:T(2,128)}', space=vmem, size = 0x400, scoped, tag = 'scratch operand']
  #allocation3 [shape = 'f32[2,32]{1,0:T(2,128)}', space=vmem, size = 0x400, scoped, tag = 'scratch operand']
  %s0 = inlined_call_operand.hbm [shape: f32[6,2,128], index: 0, kind: input, shape index: {}]
  %s1 = inlined_call_operand.hbm [shape: f32[2,8,32], index: 1, kind: input, shape index: {}]
  %s2 = inlined_call_operand.hbm [shape: f32[2,8,32], index: 2, kind: input, shape index: {}]
  %s3 = inlined_call_operand.hbm [shape: f32[32,32], index: 3, kind: input, shape index: {}]
  %s4 = inlined_call_operand.vmem [shape: f32[1,32], index: 4, kind: input, shape index: {}]
  %s5 = inlined_call_operand.vmem [shape: f32[1,32], index: 5, kind: input, shape index: {}]
  %s6 = inlined_call_operand.hbm [shape: f32[64,128], index: 6, kind: input, shape index: {}]
  %s7 = inlined_call_operand.vmem [shape: f32[1,128], index: 7, kind: input, shape index: {}]
  %s8 = inlined_call_operand.hbm [shape: f32[6,2,32], index: 8, kind: output, shape index: {}]
  %s9 = sld [smem:[#allocation0]]
  $region89: #{tpu_custom_call.1} parent=0
    _
  %s11 = ssub.s32 1, %s9
  %s12 = scalar_select 0, %s11, %s9
  $region1: #{tpu_custom_call.1} parent=0
    #allocation4 [shape = 'u8[6144]{0}', space=vmem, size = 0x1800, scoped, tag = 'input window, operand 0, single buffered']
    #allocation5 [shape = 's32[2]{0}', space=sflag, size = 0x8, scoped, tag = 'scoped memory for tpu_custom_call.1']
    #allocation6 [shape = 's32[2]{0}', space=sflag, size = 0x8, scoped, tag = 'scoped memory for tpu_custom_call.1']
    #allocation7 [shape = 'u8[8192]{0}', space=vmem, size = 0x2000, scoped, tag = 'input window, operand 1, single buffered']
    #allocation8 [shape = 's32[1]{0}', space=sflag, size = 0x4, scoped, tag = 'scoped memory for tpu_custom_call.1']
    #allocation9 [shape = 'u8[8192]{0}', space=vmem, size = 0x2000, scoped, tag = 'input window, operand 2, single buffered']
    #allocation10 [shape = 'u8[16384]{0}', space=vmem, size = 0x4000, scoped, tag = 'input window, operand 3, single buffered']
    #allocation11 [shape = 's32[1]{0}', space=sflag, size = 0x4, scoped, tag = 'scoped memory for tpu_custom_call.1']
    #allocation12 [shape = 'u8[32768]{0}', space=vmem, size = 0x8000, scoped, tag = 'input window, operand 6, single buffered']
    #allocation13 [shape = 'u8[2048]{0}', space=vmem, size = 0x800, scoped, tag = 'output window, operand 0']
    %13 = vsyncpa [#allocation5], 0
    %14 = vsyncpa [#allocation8], 0
    %15 = vsyncpa [#allocation11], 0
    %16 = vsyncpa [#allocation6], 0
    %s17 = scalar_lea.sflag [#allocation6], 1
    %18 = vsyncpa %s17, 0
    loop: start=0, step=1, limit=8
    $region2: #{tpu_custom_call.1} parent=1 // loop_pre_header
      _
    $region3: #{tpu_custom_call.1} parent=1 // loop_header
      %s20 = sphi 0, %s24
      %p21 = scmp.ge.s32.totalorder %s20, 8
      %s28 = sphi 0, %s28
      %s30 = sphi 0, %s28
      %s31 = sphi 0, %s30
      %s45 = sphi 0, %s31
      %s49 = sphi 0, %s49
      %s51 = sphi 0, %s49
      %s52 = sphi 0, %s51
      %s66 = sphi 0, %s52
      %s70 = sphi 0, %s70
      %s72 = sphi 0, %s70
      %s73 = sphi 0, %s72
      %s87 = sphi 0, %s73
      %s91 = sphi 0, %s91
      %s93 = sphi 0, %s91
      %s94 = sphi 0, %s93
      %s108 = sphi 0, %s94
      %s112 = sphi 0, %s112
      %s114 = sphi 0, %s112
      %s115 = sphi 0, %s114
      %s129 = sphi 0, %s115
      %s133 = sphi 0, %s133
      %s135 = sphi 0, %s133
      %s136 = sphi 0, %s135
      %s150 = sphi 0, %s136
      %s154 = sphi 0, %s154
      %s156 = sphi 0, %s154
      %s157 = sphi 0, %s156
      %s171 = sphi 0, %s157
      %s175 = sphi 0, %s175
      %s177 = sphi 0, %s175
      %s178 = sphi 0, %s177
      %s192 = sphi 0, %s178
      %s198 = sphi 0, %s200
      %s201 = sphi 0, %s198
      %s202 = sphi 0, %s201
      %s218 = sphi 0, %s202
    $region4: #{tpu_custom_call.1} parent=1 // loop_header_branch
      %23 = sbr.rel (%p21) target = $region8
    $region5: #{tpu_custom_call.1} parent=1 // loop_body
      %s25 = ssub.s32 %s20, 1
      %s26 = ssub.s32 %s20, 2
      %s27 = sadd.s32 %s20, 1
      %s29 = sadd.s32 %s28, 1
      %p32 = scmp.eq.s32.totalorder %s20, 5
      %p33 = scmp.ne.s32.totalorder %s28, %s30
      %p34 = scmp.eq.s32.totalorder %s20, 0
      %p35 = por %p33, %p34
      %p36 = scmp.ne.s32.totalorder %s28, %s30
      %p37 = scmp.eq.s32.totalorder %s25, 5
      %p38 = por %p36, %p37
      %p39 = scmp.ne.s32.totalorder %s30, %s31
      %p40 = scmp.eq.s32.totalorder %s25, 0
      %p41 = por %p39, %p40
      %p42 = scmp.ne.s32.totalorder %s30, %s31
      %p43 = scmp.eq.s32.totalorder %s26, 5
      %p44 = por %p42, %p43
      %p46 = scmp.ne.s32.totalorder %s31, %s45
      %p47 = scmp.eq.s32.totalorder %s26, 0
      %p48 = por %p46, %p47
      %s50 = sadd.s32 %s49, 1
      %p53 = scmp.eq.s32.totalorder %s20, 5
      %p54 = scmp.ne.s32.totalorder %s49, %s51
      %p55 = scmp.eq.s32.totalorder %s20, 0
      %p56 = por %p54, %p55
      %p57 = scmp.ne.s32.totalorder %s49, %s51
      %p58 = scmp.eq.s32.totalorder %s25, 5
      %p59 = por %p57, %p58
      %p60 = scmp.ne.s32.totalorder %s51, %s52
      %p61 = scmp.eq.s32.totalorder %s25, 0
      %p62 = por %p60, %p61
      %p63 = scmp.ne.s32.totalorder %s51, %s52
      %p64 = scmp.eq.s32.totalorder %s26, 5
      %p65 = por %p63, %p64
      %p67 = scmp.ne.s32.totalorder %s52, %s66
      %p68 = scmp.eq.s32.totalorder %s26, 0
      %p69 = por %p67, %p68
      %s71 = sadd.s32 %s70, 1
      %p74 = scmp.eq.s32.totalorder %s20, 5
      %p75 = scmp.ne.s32.totalorder %s70, %s72
      %p76 = scmp.eq.s32.totalorder %s20, 0
      %p77 = por %p75, %p76
      %p78 = scmp.ne.s32.totalorder %s70, %s72
      %p79 = scmp.eq.s32.totalorder %s25, 5
      %p80 = por %p78, %p79
      %p81 = scmp.ne.s32.totalorder %s72, %s73
      %p82 = scmp.eq.s32.totalorder %s25, 0
      %p83 = por %p81, %p82
      %p84 = scmp.ne.s32.totalorder %s72, %s73
      %p85 = scmp.eq.s32.totalorder %s26, 5
      %p86 = por %p84, %p85
      %p88 = scmp.ne.s32.totalorder %s73, %s87
      %p89 = scmp.eq.s32.totalorder %s26, 0
      %p90 = por %p88, %p89
      %s92 = sadd.s32 %s91, 1
      %p95 = scmp.eq.s32.totalorder %s20, 5
      %p96 = scmp.ne.s32.totalorder %s91, %s93
      %p97 = scmp.eq.s32.totalorder %s20, 0
      %p98 = por %p96, %p97
      %p99 = scmp.ne.s32.totalorder %s91, %s93
      %p100 = scmp.eq.s32.totalorder %s25, 5
      %p101 = por %p99, %p100
      %p102 = scmp.ne.s32.totalorder %s93, %s94
      %p103 = scmp.eq.s32.totalorder %s25, 0
      %p104 = por %p102, %p103
      %p105 = scmp.ne.s32.totalorder %s93, %s94
      %p106 = scmp.eq.s32.totalorder %s26, 5
      %p107 = por %p105, %p106
      %p109 = scmp.ne.s32.totalorder %s94, %s108
      %p110 = scmp.eq.s32.totalorder %s26, 0
      %p111 = por %p109, %p110
      %s113 = sadd.s32 %s112, 1
      %p116 = scmp.eq.s32.totalorder %s20, 5
      %p117 = scmp.ne.s32.totalorder %s112, %s114
      %p118 = scmp.eq.s32.totalorder %s20, 0
      %p119 = por %p117, %p118
      %p120 = scmp.ne.s32.totalorder %s112, %s114
      %p121 = scmp.eq.s32.totalorder %s25, 5
      %p122 = por %p120, %p121
      %p123 = scmp.ne.s32.totalorder %s114, %s115
      %p124 = scmp.eq.s32.totalorder %s25, 0
      %p125 = por %p123, %p124
      %p126 = scmp.ne.s32.totalorder %s114, %s115
      %p127 = scmp.eq.s32.totalorder %s26, 5
      %p128 = por %p126, %p127
      %p130 = scmp.ne.s32.totalorder %s115, %s129
      %p131 = scmp.eq.s32.totalorder %s26, 0
      %p132 = por %p130, %p131
      %s134 = sadd.s32 %s133, 1
      %p137 = scmp.eq.s32.totalorder %s20, 5
      %p138 = scmp.ne.s32.totalorder %s133, %s135
      %p139 = scmp.eq.s32.totalorder %s20, 0
      %p140 = por %p138, %p139
      %p141 = scmp.ne.s32.totalorder %s133, %s135
      %p142 = scmp.eq.s32.totalorder %s25, 5
      %p143 = por %p141, %p142
      %p144 = scmp.ne.s32.totalorder %s135, %s136
      %p145 = scmp.eq.s32.totalorder %s25, 0
      %p146 = por %p144, %p145
      %p147 = scmp.ne.s32.totalorder %s135, %s136
      %p148 = scmp.eq.s32.totalorder %s26, 5
      %p149 = por %p147, %p148
      %p151 = scmp.ne.s32.totalorder %s136, %s150
      %p152 = scmp.eq.s32.totalorder %s26, 0
      %p153 = por %p151, %p152
      %s155 = sadd.s32 %s154, 1
      %p158 = scmp.eq.s32.totalorder %s20, 5
      %p159 = scmp.ne.s32.totalorder %s154, %s156
      %p160 = scmp.eq.s32.totalorder %s20, 0
      %p161 = por %p159, %p160
      %p162 = scmp.ne.s32.totalorder %s154, %s156
      %p163 = scmp.eq.s32.totalorder %s25, 5
      %p164 = por %p162, %p163
      %p165 = scmp.ne.s32.totalorder %s156, %s157
      %p166 = scmp.eq.s32.totalorder %s25, 0
      %p167 = por %p165, %p166
      %p168 = scmp.ne.s32.totalorder %s156, %s157
      %p169 = scmp.eq.s32.totalorder %s26, 5
      %p170 = por %p168, %p169
      %p172 = scmp.ne.s32.totalorder %s157, %s171
      %p173 = scmp.eq.s32.totalorder %s26, 0
      %p174 = por %p172, %p173
      %s176 = sadd.s32 %s175, 1
      %p179 = scmp.eq.s32.totalorder %s20, 5
      %p180 = scmp.ne.s32.totalorder %s175, %s177
      %p181 = scmp.eq.s32.totalorder %s20, 0
      %p182 = por %p180, %p181
      %p183 = scmp.ne.s32.totalorder %s175, %s177
      %p184 = scmp.eq.s32.totalorder %s25, 5
      %p185 = por %p183, %p184
      %p186 = scmp.ne.s32.totalorder %s177, %s178
      %p187 = scmp.eq.s32.totalorder %s25, 0
      %p188 = por %p186, %p187
      %p189 = scmp.ne.s32.totalorder %s177, %s178
      %p190 = scmp.eq.s32.totalorder %s26, 5
      %p191 = por %p189, %p190
      %p193 = scmp.ne.s32.totalorder %s178, %s192
      %p194 = scmp.eq.s32.totalorder %s26, 0
      %p195 = por %p193, %p194
      %s196 = ssub.s32 %s20, %s27
      %p197 = scmp.eq.s32.totalorder %s196, 0
      %s199 = sadd.s32 %s198, 1
      %s200 = scalar_select %p197, %s198, %s199
      %p203 = pneg %p197
      %p204 = scmp.eq.s32.totalorder %s20, 5
      %p205 = por %p203, %p204
      %p206 = scmp.ne.s32.totalorder %s198, %s201
      %p207 = scmp.eq.s32.totalorder %s20, 0
      %p208 = por %p206, %p207
      %p209 = scmp.ne.s32.totalorder %s198, %s201
      %p210 = scmp.eq.s32.totalorder %s25, 5
      %p211 = por %p209, %p210
      %p212 = scmp.ne.s32.totalorder %s201, %s202
      %p213 = scmp.eq.s32.totalorder %s25, 0
      %p214 = por %p212, %p213
      %p215 = scmp.ne.s32.totalorder %s201, %s202
      %p216 = scmp.eq.s32.totalorder %s26, 5
      %p217 = por %p215, %p216
      %p219 = scmp.ne.s32.totalorder %s202, %s218
      %p220 = scmp.eq.s32.totalorder %s26, 0
      %p221 = por %p219, %p220
      %p222 = scmp.le.s32.totalorder 1, %s20
      %p223 = scmp.lt.s32.totalorder %s20, 7
      %p224 = pnand %p222, %p223
      %p225 = pneg %p224
      // Predicated region
      $region9: #{tpu_custom_call.1} parent=5 // pred_check
        _
      $region10: #{tpu_custom_call.1} parent=5 // pred_check_branch
        %227 = sbr.rel (%p224) target = $region12
      $region11: #{tpu_custom_call.1} parent=5 // pred_region
        %s228 = ssub.s32 %s20, 1
        // Predicated region
        $region13: #{tpu_custom_call.1} parent=11 // pred_check
          %p229 = pneg %p41
        $region14: #{tpu_custom_call.1} parent=11 // pred_check_branch
          %231 = sbr.rel (%p229) target = $region16
        $region15: #{tpu_custom_call.1} parent=11 // pred_region
          %233 = vsyncadd [#allocation5], 0
          %s234 = sshll.u32 %s0, 4
          %s235 = int_to_ptr.hbm [resolvable:$true] %s234
          %s236 = sshll.u32 [#allocation4], 4
          %s237 = int_to_ptr.vmem [resolvable:$true] %s236
          %242 = dma.hbm_to_vmem [thread:$0]  %s235, 192, %s237, [#allocation5], 32, 32, 2
        $region16: #{tpu_custom_call.1} parent=11 // pred_fallthru
          _
        // Predicated region
        $region17: #{tpu_custom_call.1} parent=11 // pred_check
          %p243 = pneg %p62
        $region18: #{tpu_custom_call.1} parent=11 // pred_check_branch
          %245 = sbr.rel (%p243) target = $region20
        $region19: #{tpu_custom_call.1} parent=11 // pred_region
          %247 = vsyncadd [#allocation8], 0
          %s248 = sshll.u32 %s1, 4
          %s249 = int_to_ptr.hbm [resolvable:$true] %s248
          %s250 = sshll.u32 [#allocation7], 4
          %s251 = int_to_ptr.vmem [resolvable:$true] %s250
          %256 = dma.hbm_to_vmem [thread:$0]  %s249, 256, %s251, [#allocation8], 128, 128, 8
        $region20: #{tpu_custom_call.1} parent=11 // pred_fallthru
          _
        // Predicated region
        $region21: #{tpu_custom_call.1} parent=11 // pred_check
          %p257 = pneg %p83
        $region22: #{tpu_custom_call.1} parent=11 // pred_check_branch
          %259 = sbr.rel (%p257) target = $region24
        $region23: #{tpu_custom_call.1} parent=11 // pred_region
          %261 = vsyncadd [#allocation8], 0
          %s262 = sshll.u32 %s2, 4
          %s263 = int_to_ptr.hbm [resolvable:$true] %s262
          %s264 = sshll.u32 [#allocation9], 4
          %s265 = int_to_ptr.vmem [resolvable:$true] %s264
          %270 = dma.hbm_to_vmem [thread:$0]  %s263, 256, %s265, [#allocation8], 128, 128, 8
        $region24: #{tpu_custom_call.1} parent=11 // pred_fallthru
          _
        // Predicated region
        $region25: #{tpu_custom_call.1} parent=11 // pred_check
          %p271 = pneg %p104
        $region26: #{tpu_custom_call.1} parent=11 // pred_check_branch
          %273 = sbr.rel (%p271) target = $region28
        $region27: #{tpu_custom_call.1} parent=11 // pred_region
          %275 = vsyncadd [#allocation11], 0
          %s276 = sshll.u32 %s3, 4
          %s277 = int_to_ptr.hbm [resolvable:$true] %s276
          %s278 = sshll.u32 [#allocation10], 4
          %s279 = int_to_ptr.vmem [resolvable:$true] %s278
          %284 = dma.hbm_to_vmem [thread:$0]  %s277, 512, %s279, [#allocation11], 128, 128, 8
        $region28: #{tpu_custom_call.1} parent=11 // pred_fallthru
          _
        // Predicated region
        $region29: #{tpu_custom_call.1} parent=11 // pred_check
          %p285 = pneg %p125
        $region30: #{tpu_custom_call.1} parent=11 // pred_check_branch
          %287 = sbr.rel (%p285) target = $region32
        $region31: #{tpu_custom_call.1} parent=11 // pred_region
          _
        $region32: #{tpu_custom_call.1} parent=11 // pred_fallthru
          _
        // Predicated region
        $region33: #{tpu_custom_call.1} parent=11 // pred_check
          %p288 = pneg %p146
        $region34: #{tpu_custom_call.1} parent=11 // pred_check_branch
          %290 = sbr.rel (%p288) target = $region36
        $region35: #{tpu_custom_call.1} parent=11 // pred_region
          _
        $region36: #{tpu_custom_call.1} parent=11 // pred_fallthru
          _
        // Predicated region
        $region37: #{tpu_custom_call.1} parent=11 // pred_check
          %p291 = pneg %p167
        $region38: #{tpu_custom_call.1} parent=11 // pred_check_branch
          %293 = sbr.rel (%p291) target = $region40
        $region39: #{tpu_custom_call.1} parent=11 // pred_region
          %295 = vsyncadd [#allocation11], 0
          %s296 = sshll.u32 %s6, 4
          %s297 = int_to_ptr.hbm [resolvable:$true] %s296
          %s298 = sshll.u32 [#allocation12], 4
          %s299 = int_to_ptr.vmem [resolvable:$true] %s298
          %304 = dma.hbm_to_vmem [thread:$0]  %s297, 1024, %s299, [#allocation11], 128, 128, 8
        $region40: #{tpu_custom_call.1} parent=11 // pred_fallthru
          _
        // Predicated region
        $region41: #{tpu_custom_call.1} parent=11 // pred_check
          %p305 = pneg %p188
        $region42: #{tpu_custom_call.1} parent=11 // pred_check_branch
          %307 = sbr.rel (%p305) target = $region44
        $region43: #{tpu_custom_call.1} parent=11 // pred_region
          _
        $region44: #{tpu_custom_call.1} parent=11 // pred_fallthru
          _
      $region12: #{tpu_custom_call.1} parent=5 // pred_fallthru
        _
      %p308 = scmp.lt.s32.totalorder %s20, 6
      // Predicated region
      $region45: #{tpu_custom_call.1} parent=5 // pred_check
        %p309 = pneg %p308
      $region46: #{tpu_custom_call.1} parent=5 // pred_check_branch
        %311 = sbr.rel (%p309) target = $region48
      $region47: #{tpu_custom_call.1} parent=5 // pred_region
        _
      $region48: #{tpu_custom_call.1} parent=5 // pred_fallthru
        _
      %p312 = scmp.le.s32.totalorder 1, %s20
      %p313 = scmp.lt.s32.totalorder %s20, 7
      %p314 = pnand %p312, %p313
      %p315 = pneg %p314
      // Predicated region
      $region49: #{tpu_custom_call.1} parent=5 // pred_check
        _
      $region50: #{tpu_custom_call.1} parent=5 // pred_check_branch
        %317 = sbr.rel (%p314) target = $region52
      $region51: #{tpu_custom_call.1} parent=5 // pred_region
        %s318 = ssub.s32 %s20, 1
        // Predicated region
        $region53: #{tpu_custom_call.1} parent=51 // pred_check
          %p319 = pneg %p41
        $region54: #{tpu_custom_call.1} parent=51 // pred_check_branch
          %321 = sbr.rel (%p319) target = $region56
        $region55: #{tpu_custom_call.1} parent=51 // pred_region
          %323 = dma.done [#allocation5], 192
        $region56: #{tpu_custom_call.1} parent=51 // pred_fallthru
          _
        // Predicated region
        $region57: #{tpu_custom_call.1} parent=51 // pred_check
          %p324 = pneg %p62
        $region58: #{tpu_custom_call.1} parent=51 // pred_check_branch
          %326 = sbr.rel (%p324) target = $region60
        $region59: #{tpu_custom_call.1} parent=51 // pred_region
          %328 = dma.done [#allocation8], 256
        $region60: #{tpu_custom_call.1} parent=51 // pred_fallthru
          _
        // Predicated region
        $region61: #{tpu_custom_call.1} parent=51 // pred_check
          %p329 = pneg %p83
        $region62: #{tpu_custom_call.1} parent=51 // pred_check_branch
          %331 = sbr.rel (%p329) target = $region64
        $region63: #{tpu_custom_call.1} parent=51 // pred_region
          %333 = dma.done [#allocation8], 256
        $region64: #{tpu_custom_call.1} parent=51 // pred_fallthru
          _
        // Predicated region
        $region65: #{tpu_custom_call.1} parent=51 // pred_check
          %p334 = pneg %p104
        $region66: #{tpu_custom_call.1} parent=51 // pred_check_branch
          %336 = sbr.rel (%p334) target = $region68
        $region67: #{tpu_custom_call.1} parent=51 // pred_region
          %338 = dma.done [#allocation11], 512
        $region68: #{tpu_custom_call.1} parent=51 // pred_fallthru
          _
        // Predicated region
        $region69: #{tpu_custom_call.1} parent=51 // pred_check
          %p339 = pneg %p167
        $region70: #{tpu_custom_call.1} parent=51 // pred_check_branch
          %341 = sbr.rel (%p339) target = $region72
        $region71: #{tpu_custom_call.1} parent=51 // pred_region
          %343 = dma.done [#allocation11], 1024
        $region72: #{tpu_custom_call.1} parent=51 // pred_fallthru
          _
        %p344 = pneg %p41
        %p345 = pneg %p38
        %p346 = pneg %p62
        %p347 = pneg %p59
        %p348 = pneg %p83
        %p349 = pneg %p80
        %p350 = pneg %p104
        %p351 = pneg %p101
        %p352 = pneg %p125
        %p353 = pneg %p122
        %p354 = pneg %p146
        %p355 = pneg %p143
        %p356 = pneg %p167
        %p357 = pneg %p164
        %p358 = pneg %p188
        %p359 = pneg %p185
        %p360 = pneg %p214
        %p361 = pneg %p211
        %s362 = sand.u32 %s201, 1
        %s363 = scalar_lea.sflag [#allocation6], %s362
        %s364 = sand.u32 %s201, 1
        %s365 = smul.addr %s364, 2
        %s366 = scalar_lea.vmem [#allocation13], %s365
        %p367 = scmp.eq.s32.totalorder %s25, 0
        // Predicated region
        $region73: #{tpu_custom_call.1} parent=51 // pred_check
          %p368 = pneg %p367
        $region74: #{tpu_custom_call.1} parent=51 // pred_check_branch
          %370 = sbr.rel (%p368) target = $region76
        $region75: #{tpu_custom_call.1} parent=51 // pred_region
          %vm371 = vcmask 254976
          %372 = vst.msk [vmem:[#allocation2] sm:$0x3] %vm371, 0.0
          %373 = vst.msk [vmem:[#allocation3] sm:$0x3] %vm371, 0.0
        $region76: #{tpu_custom_call.1} parent=51 // pred_fallthru
          _
        %v374 = vld [vmem:[#allocation2] sm:$0x3]
        %v375 = vld [vmem:[#allocation3] sm:$0x3]
        %v376 = vld [vmem:[#allocation10] sm:$0xff]
        %v377 = vld [vmem:[#allocation10 + $0x8] sm:$0xff]
        %v378 = vld [vmem:[#allocation10 + $0x10] sm:$0xff]
        %v379 = vld [vmem:[#allocation10 + $0x18] sm:$0xff]
        %v380 = vld [vmem:[%s4] sm:$0x1]
        %v382 = vperm.slane %v380, 0
        %vm384 = vcmask 261120
        %v386 = vsel %vm384, %v374, 0
        %388 = vmatpush.msra.mxu0 0.0
        %389 = vmatpush.msra.mxu0 0.0
        %390 = vmatpush.msra.mxu0 0.0
        %391 = vmatpush.msra.mxu0 0.0
        %392 = vmatpush.msra.mxu0 0.0
        %393 = vmatpush.msra.mxu0 0.0
        %394 = vmatpush.msra.mxu0 0.0
        %395 = vmatpush.msra.mxu0 0.0
        %396 = vmatpush.msra.mxu0 0.0
        %397 = vmatpush.msra.mxu0 0.0
        %398 = vmatpush.msra.mxu0 0.0
        %399 = vmatpush.msra.mxu0 0.0
        %400 = vmatpush.msra.mxu0 %v379
        %401 = vmatpush.msra.mxu0 %v378
        %402 = vmatpush.msra.mxu0 %v377
        %403 = vmatpush.msra.mxu0 %v376
        %404 = vmatmul.f32.gmra.mxu0 %v386
        %v405 = vpop.f32.mrf.mxu0
        %v406 = vadd.f32 %v382, %v405
        %407 = vdwg.mxu0
        %v408 = vld [vmem:[#allocation9] sm:$0xff]
        %v409 = vld [vmem:[#allocation9 + $0x8] sm:$0xff]
        %v411 = vrot.slane %v406, 1
        %v412 = vperm.slane %v406, 0
        %v413 = vperm.slane %v411, 0
        %v416 = vadd.f32 %v408, %v412
        %v417 = vadd.f32 %v409, %v413
        %v418 = vtanh.pop %v416
        %v419 = vtanh.pop %v417
        %v420 = vld [vmem:[%s5] sm:$0x1]
        %v422 = vperm.slane %v420, 0
        %v424 = vmul.f32 %v418, %v422
        %v425 = vmul.f32 %v419, %v422
        %v426 = vsel %vm384, %v424, 0.0
        %427 = vadd.xlane.f32.xlu0 %v426
        %v428 = vpop.xlane.xlu0 %427
        %v429 = vsel %vm384, %v425, 0.0
        %430 = vadd.xlane.f32.xlu0 %v429
        %v431 = vpop.xlane.xlu0 %430
        %v434 = vlaneseq
        %v435 = vand.u32 %v434, 127
        %v436 = vperm.slane %v428, %v435
        %v437 = vperm.slane %v431, %v435
        %vm438 = vcmask 1041409
        %v439 = vsel %vm438, %v437, %v436
        %vm441 = vcmask 58368
        %v442 = vsel %vm441, %v439, -inf
        %443 = vmax.xlane.f32.xlu0 %v442
        %v444 = vpop.xlane.xlu0 %443
        %v446 = vperm.slane %v444, 0
        %v447 = vperm.slane %v444, 1
        %v450 = vsub.f32 %v428, %v446
        %v451 = vsub.f32 %v431, %v447
        %v452 = vmul.f32 %v450, 1.442695
        %v453 = vpow.pop %v452
        %v454 = vmul.f32 %v451, 1.442695
        %v455 = vpow.pop %v454
        %458 = vset.pattern.permute.xlu0 0
        %459 = vperm.xlu0 %458, %v453
        %v460 = vpop.permute.xlu0 %459
        %461 = vset.pattern.permute.xlu0 0
        %462 = vperm.xlu0 %461, %v455
        %v463 = vpop.permute.xlu0 %462
        %v464 = vperm.slane %v460, %v435
        %v465 = vperm.slane %v463, %v435
        %v466 = vsel %vm438, %v465, %v464
        %v468 = vsel %vm441, %v466, 0.0
        %469 = vadd.xlane.f32.xlu0 %v468
        %v470 = vpop.xlane.xlu0 %469
        %v471 = vrcp.pop %v470
        %v473 = vperm.slane %v471, 0
        %v474 = vperm.slane %v471, 1
        %v477 = vmul.f32 %v453, %v473
        %v478 = vmul.f32 %v455, %v474
        %v479 = vld [vmem:[#allocation7] sm:$0xff]
        %v480 = vld [vmem:[#allocation7 + $0x8] sm:$0xff]
        %482 = vset.pattern.permute.xlu0 0
        %483 = vperm.xlu0 %482, %v477
        %v484 = vpop.permute.xlu0 %483
        %v485 = vperm.slane %v484, %v435
        %vm486 = vcmask 64512
        %v487 = vsel %vm486, %v485, 0
        %489 = vmatpush.msra.mxu0 0.0
        %490 = vmatpush.msra.mxu0 0.0
        %491 = vmatpush.msra.mxu0 0.0
        %492 = vmatpush.msra.mxu0 0.0
        %493 = vmatpush.msra.mxu0 0.0
        %494 = vmatpush.msra.mxu0 0.0
        %495 = vmatpush.msra.mxu0 0.0
        %496 = vmatpush.msra.mxu0 0.0
        %497 = vmatpush.msra.mxu0 0.0
        %498 = vmatpush.msra.mxu0 0.0
        %499 = vmatpush.msra.mxu0 0.0
        %500 = vmatpush.msra.mxu0 0.0
        %501 = vmatpush.msra.mxu0 0.0
        %502 = vmatpush.msra.mxu0 0.0
        %503 = vmatpush.msra.mxu0 0.0
        %504 = vmatpush.msra.mxu0 %v479
        %505 = vmatmul.f32.gmra.mxu0 %v487
        %v506 = vpop.f32.mrf.mxu0
        %v507 = vadd.f32 0.0, %v506
        %508 = vdwg.mxu0
        %510 = vset.pattern.permute.xlu0 0
        %511 = vperm.xlu0 %510, %v478
        %v512 = vpop.permute.xlu0 %511
        %v513 = vperm.slane %v512, %v435
        %v514 = vsel %vm486, %v513, 0
        %516 = vmatpush.msra.mxu0 0.0
        %517 = vmatpush.msra.mxu0 0.0
        %518 = vmatpush.msra.mxu0 0.0
        %519 = vmatpush.msra.mxu0 0.0
        %520 = vmatpush.msra.mxu0 0.0
        %521 = vmatpush.msra.mxu0 0.0
        %522 = vmatpush.msra.mxu0 0.0
        %523 = vmatpush.msra.mxu0 0.0
        %524 = vmatpush.msra.mxu0 0.0
        %525 = vmatpush.msra.mxu0 0.0
        %526 = vmatpush.msra.mxu0 0.0
        %527 = vmatpush.msra.mxu0 0.0
        %528 = vmatpush.msra.mxu0 0.0
        %529 = vmatpush.msra.mxu0 0.0
        %530 = vmatpush.msra.mxu0 0.0
        %531 = vmatpush.msra.mxu0 %v480
        %532 = vmatmul.f32.gmra.mxu0 %v514
        %v533 = vpop.f32.mrf.mxu0
        %v534 = vadd.f32 0.0, %v533
        %535 = vdwg.mxu0
        %v538 = vrot.slane %v534, 7
        %v539 = vsel %vm438, %v538, %v507
        %541 = vrot.lane.b32.xlu0 %v374, 32
        %v542 = vpop.permute.xlu0 %541
        %v544 = vsel %vm384, %v539, %v542
        %v545 = vld [vmem:[#allocation12] sm:$0xff]
        %v546 = vld [vmem:[#allocation12 + $0x8] sm:$0xff]
        %v547 = vld [vmem:[#allocation12 + $0x10] sm:$0xff]
        %v548 = vld [vmem:[#allocation12 + $0x18] sm:$0xff]
        %v549 = vld [vmem:[#allocation12 + $0x20] sm:$0xff]
        %v550 = vld [vmem:[#allocation12 + $0x28] sm:$0xff]
        %v551 = vld [vmem:[#allocation12 + $0x30] sm:$0xff]
        %v552 = vld [vmem:[#allocation12 + $0x38] sm:$0xff]
        %s553 = smul.u32 %s25, 2
        %s554 = scalar_lea.vmem [#allocation4], %s553
        %v555 = vld [vmem:[%s554] sm:$0x3]
        %vm556 = vcmask 523264
        %v558 = vsel %vm556, %v544, 0
        %560 = vmatpush.msra.mxu0 0.0
        %561 = vmatpush.msra.mxu0 0.0
        %562 = vmatpush.msra.mxu0 0.0
        %563 = vmatpush.msra.mxu0 0.0
        %564 = vmatpush.msra.mxu0 0.0
        %565 = vmatpush.msra.mxu0 0.0
        %566 = vmatpush.msra.mxu0 0.0
        %567 = vmatpush.msra.mxu0 0.0
        %568 = vmatpush.msra.mxu0 %v552
        %569 = vmatpush.msra.mxu0 %v551
        %570 = vmatpush.msra.mxu0 %v550
        %571 = vmatpush.msra.mxu0 %v549
        %572 = vmatpush.msra.mxu0 %v548
        %573 = vmatpush.msra.mxu0 %v547
        %574 = vmatpush.msra.mxu0 %v546
        %575 = vmatpush.msra.mxu0 %v545
        %576 = vmatmul.f32.gmra.mxu0 %v558
        %v577 = vpop.f32.mrf.mxu0
        %v578 = vadd.f32 %v555, %v577
        %579 = vdwg.mxu0
        %v580 = vld [vmem:[%s7] sm:$0x1]
        %v582 = vperm.slane %v580, 0
        %v584 = vadd.f32 %v578, %v582
        %v585 = vxor.u32 %v584, 2147483648
        %v586 = vmul.f32 %v585, 1.442695
        %v587 = vpow.pop %v586
        %v588 = vadd.f32 %v587, 1.0
        %v589 = vrcp.pop %v588
        %v590 = vmul.f32 %v588, %v589
        %v591 = vsub.f32 1.0, %v590
        %v592 = vmul.f32 %v589, %v591
        %v593 = vadd.f32 %v589, %v592
        %vm594 = vweird.f32 %v588
        %vm595 = vweird.f32 %v589
        %vm596 = vmor %vm594, %vm595
        %v597 = vsel %vm596, %v589, %v593
        %v598 = vand.u32 2147483647, %v588
        %vm599 = vcmp.eq.f32.partialorder %v598, 8.507059e+37
        %v600 = vand.u32 %v588, 2147483648
        %v601 = vor.u32 1.1754944e-38, %v600
        %v602 = vsel %vm599, %v601, %v597
        %v603 = vmul.f32 1.0, %v602
        %v604 = vtanh.pop %v584
        %606 = vrot.lane.b32.xlu0 %v375, 32
        %v607 = vpop.permute.xlu0 %606
        %v609 = vmul.f32 %v603, %v607
        %611 = vrot.lane.b32.xlu0 %v604, 64
        %v612 = vpop.permute.xlu0 %611
        %v614 = vmul.f32 %v603, %v612
        %616 = vrot.lane.b32.xlu0 %v614, 32
        %v617 = vpop.permute.xlu0 %616
        %v619 = vadd.f32 %v609, %v617
        %v620 = vtanh.pop %v619
        %622 = vrot.lane.b32.xlu0 %v620, 64
        %v623 = vpop.permute.xlu0 %622
        %v625 = vmul.f32 %v603, %v623
        %627 = vrot.lane.b32.xlu0 %v625, 32
        %v628 = vpop.permute.xlu0 %627
        %vm630 = vcmask 254976
        %631 = vst.msk [vmem:[#allocation2] sm:$0x3] %vm630, %v628
        %633 = vrot.lane.b32.xlu0 %v619, 96
        %v634 = vpop.permute.xlu0 %633
        %636 = vst.msk [vmem:[#allocation3] sm:$0x3] %vm630, %v634
        %637 = vst.msk [vmem:[%s366] sm:$0x3] %vm630, %v628
        %s638 = sand.u32 %s201, 1
        %s639 = scalar_lea.sflag [#allocation6], %s638
        %s640 = sand.u32 %s201, 1
        %s641 = smul.addr %s640, 2
        %s642 = scalar_lea.vmem [#allocation13], %s641
        // Predicated region
        $region77: #{tpu_custom_call.1} parent=51 // pred_check
          %p643 = pneg %p211
        $region78: #{tpu_custom_call.1} parent=51 // pred_check_branch
          %645 = sbr.rel (%p643) target = $region80
        $region79: #{tpu_custom_call.1} parent=51 // pred_region
          %647 = vsyncadd %s639, 0
          %s648 = smul.addr %s25, 2
          %s649 = scalar_lea.hbm %s8, %s648
          %s651 = sshll.u32 %s642, 4
          %s652 = int_to_ptr.vmem [resolvable:$true] %s651
          %s653 = sshll.u32 %s649, 4
          %s654 = int_to_ptr.hbm [resolvable:$true] %s653
          %656 = dma.vmem_to_hbm [thread:$0]  %s652, 32, %s654, %s639
        $region80: #{tpu_custom_call.1} parent=51 // pred_fallthru
          _
      $region52: #{tpu_custom_call.1} parent=5 // pred_fallthru
        _
      %p657 = scmp.le.s32.totalorder 2, %s20
      // Predicated region
      $region81: #{tpu_custom_call.1} parent=5 // pred_check
        %p658 = pneg %p657
      $region82: #{tpu_custom_call.1} parent=5 // pred_check_branch
        %660 = sbr.rel (%p658) target = $region84
      $region83: #{tpu_custom_call.1} parent=5 // pred_region
        %s661 = ssub.s32 %s20, 2
        // Predicated region
        $region85: #{tpu_custom_call.1} parent=83 // pred_check
          %p662 = pneg %p217
        $region86: #{tpu_custom_call.1} parent=83 // pred_check_branch
          %664 = sbr.rel (%p662) target = $region88
        $region87: #{tpu_custom_call.1} parent=83 // pred_region
          %s665 = sand.u32 %s202, 1
          %s666 = scalar_lea.sflag [#allocation6], %s665
          %s667 = sand.u32 %s202, 1
          %s668 = smul.addr %s667, 2
          %s669 = scalar_lea.vmem [#allocation13], %s668
          %671 = dma.done %s666, 32
        $region88: #{tpu_custom_call.1} parent=83 // pred_fallthru
          _
      $region84: #{tpu_custom_call.1} parent=5 // pred_fallthru
        _
    $region6: #{tpu_custom_call.1} parent=1 // loop_footer
      %s24 = sadd.s32 1, %s20
    $region7: #{tpu_custom_call.1} parent=1 // loop_footer_branch
      %19 = sbr.rel target = $region3
    $region8: #{tpu_custom_call.1} parent=1 // loop_exit
      _
    %672 = vsyncpa [#allocation5], 1
    %s673 = scalar_lea.sflag [#allocation5], 1
    %674 = vsyncpa %s673, 1
    %675 = vsyncpa [#allocation8], 1
    %676 = vsyncpa [#allocation11], 1
    %677 = vsyncpa [#allocation6], 1
    %s678 = scalar_lea.sflag [#allocation6], 1
    %679 = vsyncpa %s678, 1

</llo_original>
